<compile_context>
chip_gen: v5e
topology: v5e:2x2
jax: 0.10.0
libtpu: 0.0.40
codegen_flags: <defaults>
</compile_context>

<pallas_src>
import functools

import jax
import jax.numpy as jnp
from jax.experimental import pallas as pl
from jax.experimental.pallas import tpu as pltpu

LANE = 128
SUBLANE = 8


def _round_up(x, m):
    return (x + m - 1) // m * m


def _padded_tile_bytes(shape, itemsize=4):
    """Footprint of a 2-D f32 array padded to (8,128) tiles."""
    r, c = shape
    return _round_up(r, SUBLANE) * _round_up(c, LANE) * itemsize


def _vmem_capacity_bytes():
    """Chip-aware physical VMEM capacity (v5e/v6e: 128 MiB, v7x: 64 MiB per TC)."""
    try:
        return int(pltpu.get_tpu_info().vmem_capacity_bytes)
    except Exception:
        return 64 * 1024 * 1024  # conservative fallback (v7x per-TC)


# ---------------------------------------------------------------------------
# Kernel
# ---------------------------------------------------------------------------
def _make_fused_mlp_kernel(row_offsets, row_counts, num_labels):
    """x -> [Linear+ReLU]*H -> Linear -> Sigmoid, all layers from one weight slab."""
    num_layers = len(row_counts)

    def kernel(x_ref, w_ref, b_ref, o_ref):
        h = x_ref[...]                                              # (B, dimx) f32

        # Hidden layers on full 128-lane padded tiles (padded lanes stay exactly 0).
        for l in range(num_layers - 1):
            off, rows = row_offsets[l], row_counts[l]
            w = w_ref[off:off + rows, :]                            # (rows, P), static slice
            b = b_ref[l:l + 1, :]                                   # (1, P)
            y = jnp.dot(h, w, preferred_element_type=jnp.float32) + b
            h = jnp.maximum(y, 0.0)                                 # (B, P) f32

        off_last = row_offsets[num_layers - 1]
        if num_labels == 1:
            # Final 1-wide layer on VPU (mul) + XLU (lane reduce); last weight is
            # stored transposed, lane-dense, as a single slab row -> no degenerate
            # 1-column MXU matmul and no bf16/f32 round-trips.
            w_row = w_ref[off_last:off_last + 1, :]                 # (1, P)
            y = jnp.sum(h * w_row, axis=-1, keepdims=True)          # (B, 1)
            b_last = b_ref[num_layers - 1:num_layers, 0:1]          # (1, 1)
            out = jax.nn.sigmoid(y + b_last)                        # (B, 1)
        else:
            rows = row_counts[num_layers - 1]
            w_last = w_ref[off_last:off_last + rows, :]             # (P, P)
            b_last = b_ref[num_layers - 1:num_layers, :]            # (1, P)
            y = jnp.dot(h, w_last, preferred_element_type=jnp.float32) + b_last
            out = jax.nn.sigmoid(y)[:, :num_labels]                 # (B, num_labels)

        o_ref[...] = out.astype(o_ref.dtype)

    return kernel


# ---------------------------------------------------------------------------
# One-time parameter packing (NOT in the per-call hot path)
# ---------------------------------------------------------------------------
def pack_mlp_params(params, *, num_labels, lane_pad=LANE):
    """Pack all weights into one lane-dense f32 slab and all biases into another.

    Layout (P = lane_pad = 128):
      w_slab rows: [layer0 (dimx,P)] [layer1 (P,P)] ... [last: (1,P) transposed row if
                    num_labels==1 else (P,P)], zero-padded so unused lanes/rows are 0.
      b_slab:      (num_layers, P), row l = bias of layer l zero-padded.
    """
    num_layers = len(params)
    assert num_layers >= 2, "expects at least one hidden layer"
    P = lane_pad
    assert num_labels <= P

    blocks, biases, row_offsets, row_counts = [], [], [], []
    off = 0
    for l, (w, b) in enumerate(params):
        fan_in, fan_out = w.shape
        assert fan_out <= P
        if l == num_layers - 1 and num_labels == 1:
            blk = jnp.zeros((1, P), jnp.float32).at[0, :fan_in].set(w[:, 0])
        else:
            rows = fan_in if l == 0 else P
            assert fan_in <= rows
            blk = jnp.zeros((rows, P), jnp.float32).at[:fan_in, :fan_out].set(w)
        blocks.append(blk)
        row_offsets.append(off)
        row_counts.append(blk.shape[0])
        off += blk.shape[0]
        biases.append(jnp.zeros((1, P), jnp.float32).at[0, :fan_out].set(b.reshape(-1)))

    w_slab = jnp.concatenate(blocks, axis=0)        # (sum_rows, P) f32
    b_slab = jnp.concatenate(biases, axis=0)        # (num_layers, P) f32
    return w_slab, b_slab, tuple(row_offsets), tuple(row_counts)


# ---------------------------------------------------------------------------
# Forward wrapper
# ---------------------------------------------------------------------------
def mlp_forward(x, w_slab, b_slab, *, row_offsets, row_counts, num_labels):
    """x: (B, dimx) f32; slabs from pack_mlp_params. Returns flattened sigmoid output."""
    B = x.shape[0]
    out_shape = jax.ShapeDtypeStruct((B, num_labels), jnp.float32)

    # Chip-aware VMEM budget: count (8,128)-padded tile footprints and leave headroom
    # for compiler-internal scratch; raise the scoped VMEM limit explicitly.
    footprint = (
        _padded_tile_bytes(x.shape)
        + _padded_tile_bytes(w_slab.shape)
        + _padded_tile_bytes(b_slab.shape)
        + _padded_tile_bytes((B, num_labels))
    )
    budget = int(0.75 * _vmem_capacity_bytes())
    assert footprint < budget, (
        "fused MLP kernel assumes all weights/activations fit in VMEM; "
        "use a tiled-grid variant for large shapes")
    vmem_limit = min(max(2 * footprint, 32 * 1024 * 1024), budget)

    kernel = _make_fused_mlp_kernel(row_offsets, row_counts, num_labels)
    vmem_spec = pl.BlockSpec(memory_space=pltpu.MemorySpace.VMEM)
    out = pl.pallas_call(
        kernel,
        out_shape=out_shape,
        in_specs=[vmem_spec, vmem_spec, vmem_spec],
        out_specs=vmem_spec,
        compiler_params=pltpu.CompilerParams(vmem_limit_bytes=vmem_limit),
    )(x, w_slab, b_slab)

    # x.view(-1) in the reference module.
    return out.reshape(-1)


# ---------------------------------------------------------------------------
# Init + pure-JAX reference
# ---------------------------------------------------------------------------
def init_mlp_params(key, dimx, num_labels, hidden_layers):
    """Deterministic init mimicking nn.Linear's uniform(-1/sqrt(fan_in), 1/sqrt(fan_in))."""
    layers = [dimx] + list(hidden_layers) + [num_labels]
    params = []
    for i in range(len(layers) - 1):
        fan_in, fan_out = layers[i], layers[i + 1]
        key, kw, kb = jax.random.split(key, 3)
        bound = 1.0 / (fan_in ** 0.5)
        # stored as (in, out); PyTorch stores (out, in) — transposed here for x @ W.
        w = jax.random.uniform(kw, (fan_in, fan_out), jnp.float32, -bound, bound)
        b = jax.random.uniform(kb, (1, fan_out), jnp.float32, -bound, bound)
        params.append((w, b))
    return params


def mlp_reference(x, params):
    """Pure-JAX f32 reference of the same forward pass."""
    h = x
    for (w, b) in params[:-1]:
        h = jnp.maximum(h @ w + b, 0.0)
    w, b = params[-1]
    return jax.nn.sigmoid(h @ w + b).reshape(-1)


if __name__ == "__main__":
    key = jax.random.PRNGKey(0)

    batch = 8
    dimx = 32
    hidden_layers = [64, 32]
    num_labels = 1

    kx, kp = jax.random.split(key)
    x = jax.random.normal(kx, (batch, dimx), jnp.float32)
    params = init_mlp_params(kp, dimx, num_labels, hidden_layers)

    # One-time packing (outside the per-call hot path).
    w_slab, b_slab, row_offsets, row_counts = pack_mlp_params(params, num_labels=num_labels)
    w_slab = jax.block_until_ready(w_slab)
    b_slab = jax.block_until_ready(b_slab)

    fwd = jax.jit(functools.partial(
        mlp_forward, row_offsets=row_offsets, row_counts=row_counts,
        num_labels=num_labels))
    out = jax.block_until_ready(fwd(x, w_slab, b_slab))

    ref = mlp_reference(x, params)

    assert out.shape == (batch * num_labels,)
    assert bool(jnp.all((out >= 0.0) & (out <= 1.0)))
    assert bool(jnp.allclose(out, ref, atol=2e-2, rtol=2e-2)), "mismatch vs f32 reference"

    print("KERNEL_OK")
</pallas_src>

<mosaic_0001>
module attributes {stable_mosaic.version = 11 : i64} {
  func.func @kernel(%arg0: memref<8x32xf32, #tpu.memory_space<vmem>>, %arg1: memref<161x128xf32, #tpu.memory_space<vmem>>, %arg2: memref<3x128xf32, #tpu.memory_space<vmem>>, %arg3: memref<8x1xf32, #tpu.memory_space<vmem>>) attributes {dimension_semantics = [], scalar_prefetch = 0 : i64, scratch_operands = 0 : i64, tpu.core_type = #tpu.core_type<tc>} {
    %c0 = arith.constant 0 : index
    %c0_0 = arith.constant 0 : index
    %0 = vector.load %arg0[%c0, %c0_0] : memref<8x32xf32, #tpu.memory_space<vmem>>, vector<8x32xf32>
    %c0_1 = arith.constant 0 : index
    %c0_2 = arith.constant 0 : index
    %1 = vector.load %arg1[%c0_1, %c0_2] : memref<161x128xf32, #tpu.memory_space<vmem>>, vector<32x128xf32>
    %c0_3 = arith.constant 0 : index
    %c0_4 = arith.constant 0 : index
    %2 = vector.load %arg2[%c0_3, %c0_4] : memref<3x128xf32, #tpu.memory_space<vmem>>, vector<1x128xf32>
    %cst = arith.constant dense<0.000000e+00> : vector<8x128xf32>
    %3 = tpu.matmul %0, %1, %cst {dimension_numbers = #tpu.dot_dimension_numbers<[1], [0], [0], [1], [0, 0, 1, 1], [], []>} : vector<8x32xf32>, vector<32x128xf32>, vector<8x128xf32> -> vector<8x128xf32>
    %4 = vector.broadcast %2 : vector<1x128xf32> to vector<8x128xf32>
    %5 = arith.addf %3, %4 : vector<8x128xf32>
    %cst_5 = arith.constant 0.000000e+00 : f32
    %6 = vector.broadcast %cst_5 : f32 to vector<8x128xf32>
    %7 = arith.maximumf %5, %6 : vector<8x128xf32>
    %c32 = arith.constant 32 : index
    %c0_6 = arith.constant 0 : index
    %8 = vector.load %arg1[%c32, %c0_6] : memref<161x128xf32, #tpu.memory_space<vmem>>, vector<128x128xf32>
    %c1 = arith.constant 1 : index
    %c0_7 = arith.constant 0 : index
    %9 = vector.load %arg2[%c1, %c0_7] : memref<3x128xf32, #tpu.memory_space<vmem>>, vector<1x128xf32>
    %cst_8 = arith.constant dense<0.000000e+00> : vector<8x128xf32>
    %10 = tpu.matmul %7, %8, %cst_8 {dimension_numbers = #tpu.dot_dimension_numbers<[1], [0], [0], [1], [0, 0, 1, 1], [], []>} : vector<8x128xf32>, vector<128x128xf32>, vector<8x128xf32> -> vector<8x128xf32>
    %11 = vector.broadcast %9 : vector<1x128xf32> to vector<8x128xf32>
    %12 = arith.addf %10, %11 : vector<8x128xf32>
    %cst_9 = arith.constant 0.000000e+00 : f32
    %13 = vector.broadcast %cst_9 : f32 to vector<8x128xf32>
    %14 = arith.maximumf %12, %13 : vector<8x128xf32>
    %c160 = arith.constant 160 : index
    %c0_10 = arith.constant 0 : index
    %15 = vector.load %arg1[%c160, %c0_10] : memref<161x128xf32, #tpu.memory_space<vmem>>, vector<1x128xf32>
    %16 = vector.broadcast %15 : vector<1x128xf32> to vector<8x128xf32>
    %17 = arith.mulf %14, %16 : vector<8x128xf32>
    %cst_11 = arith.constant dense<0.000000e+00> : vector<8xf32>
    %18 = vector.multi_reduction <add>, %17, %cst_11 [1] : vector<8x128xf32> to vector<8xf32>
    %19 = vector.shape_cast %18 : vector<8xf32> to vector<8x1xf32>
    %c2 = arith.constant 2 : index
    %c0_12 = arith.constant 0 : index
    %20 = vector.load %arg2[%c2, %c0_12] : memref<3x128xf32, #tpu.memory_space<vmem>>, vector<1x1xf32>
    %21 = vector.broadcast %20 : vector<1x1xf32> to vector<8x1xf32>
    %22 = arith.addf %19, %21 : vector<8x1xf32>
    %23 = arith.negf %22 : vector<8x1xf32>
    %24 = math.exp %23 : vector<8x1xf32>
    %cst_13 = arith.constant 1.000000e+00 : f32
    %25 = vector.broadcast %cst_13 : f32 to vector<8x1xf32>
    %26 = arith.addf %25, %24 : vector<8x1xf32>
    %27 = arith.divf %25, %26 : vector<8x1xf32>
    %c0_14 = arith.constant 0 : index
    %c0_15 = arith.constant 0 : index
    %28 = vector.load %arg3[%c0_14, %c0_15] : memref<8x1xf32, #tpu.memory_space<vmem>>, vector<8x1xf32>
    tpu.vector_store %arg3[%c0_14, %c0_15], %27 {strides = array<i32>} : memref<8x1xf32, #tpu.memory_space<vmem>>, vector<8x1xf32>,
    return
  }
}

</mosaic_0001>

<llo_original>
// kernel: mlp_forward.1
$region0: #{mlp_forward.1}
  #allocation0 [shape = 'u32[]', space=smem, size = 0x4, offset = 0x4, fixed_abs, tag = 'smem constant byte address 0x4 - core index']
  #allocation1 [shape = 'u32[72,128]{1,0:T(1,128)}', space=vmem, size = 0x9000, scoped, tag = 'internal scratch']
  %s0 = inlined_call_operand.hbm [shape: f32[8,32], index: 0, kind: input, shape index: {}]
  %s1 = inlined_call_operand.hbm [shape: f32[161,128], index: 1, kind: input, shape index: {}]
  %s2 = inlined_call_operand.hbm [shape: f32[3,128], index: 2, kind: input, shape index: {}]
  %s3 = inlined_call_operand.vmem [shape: f32[8,1], index: 3, kind: output, shape index: {}]
  %s4 = sld [smem:[#allocation0]]
  $region34: #{mlp_forward.1} parent=0
    _
  %s6 = ssub.s32 1, %s4
  %s7 = scalar_select 0, %s6, %s4
  $region1: #{mlp_forward.1} parent=0
    #allocation2 [shape = 'u8[4096]{0}', space=vmem, size = 0x1000, scoped, tag = 'input window, operand 0, single buffered']
    #allocation3 [shape = 's32[1]{0}', space=sflag, size = 0x4, scoped, tag = 'scoped memory for mlp_forward.1']
    #allocation4 [shape = 'u8[86016]{0}', space=vmem, size = 0x15000, scoped, tag = 'input window, operand 1, single buffered']
    #allocation5 [shape = 's32[1]{0}', space=sflag, size = 0x4, scoped, tag = 'scoped memory for mlp_forward.1']
    #allocation6 [shape = 'u8[2048]{0}', space=vmem, size = 0x800, scoped, tag = 'input window, operand 2, single buffered']
    %8 = vsyncpa [#allocation3], 0
    %9 = vsyncpa [#allocation5], 0
    // Predicated region
    $region2: #{mlp_forward.1} parent=1 // pred_check
      _
    $region3: #{mlp_forward.1} parent=1 // pred_check_branch
      %11 = sbr.rel (0) target = $region5
    $region4: #{mlp_forward.1} parent=1 // pred_region
      %13 = vsyncadd [#allocation3], 0
      %s15 = sshll.u32 %s0, 4
      %s16 = int_to_ptr.hbm [resolvable:$true] %s15
      %s17 = sshll.u32 [#allocation2], 4
      %s18 = int_to_ptr.vmem [resolvable:$true] %s17
      %20 = dma.hbm_to_vmem [thread:$0]  %s16, 128, %s18, [#allocation3]
    $region5: #{mlp_forward.1} parent=1 // pred_fallthru
      _
    // Predicated region
    $region6: #{mlp_forward.1} parent=1 // pred_check
      _
    $region7: #{mlp_forward.1} parent=1 // pred_check_branch
      %22 = sbr.rel (0) target = $region9
    $region8: #{mlp_forward.1} parent=1 // pred_region
      %24 = vsyncadd [#allocation5], 0
      %s25 = sshll.u32 %s1, 4
      %s26 = int_to_ptr.hbm [resolvable:$true] %s25
      %s27 = sshll.u32 [#allocation4], 4
      %s28 = int_to_ptr.vmem [resolvable:$true] %s27
      %33 = dma.hbm_to_vmem [thread:$0]  %s26, 2688, %s28, [#allocation5], 128, 128, 8
    $region9: #{mlp_forward.1} parent=1 // pred_fallthru
      _
    // Predicated region
    $region10: #{mlp_forward.1} parent=1 // pred_check
      _
    $region11: #{mlp_forward.1} parent=1 // pred_check_branch
      %35 = sbr.rel (0) target = $region13
    $region12: #{mlp_forward.1} parent=1 // pred_region
      %37 = vsyncadd [#allocation5], 0
      %s39 = sshll.u32 %s2, 4
      %s40 = int_to_ptr.hbm [resolvable:$true] %s39
      %s41 = sshll.u32 [#allocation6], 4
      %s42 = int_to_ptr.vmem [resolvable:$true] %s41
      %44 = dma.hbm_to_vmem [thread:$0]  %s40, 64, %s42, [#allocation5]
    $region13: #{mlp_forward.1} parent=1 // pred_fallthru
      _
    // Predicated region
    $region14: #{mlp_forward.1} parent=1 // pred_check
      _
    $region15: #{mlp_forward.1} parent=1 // pred_check_branch
      %46 = sbr.rel (0) target = $region17
    $region16: #{mlp_forward.1} parent=1 // pred_region
      %48 = dma.done [#allocation3], 128
    $region17: #{mlp_forward.1} parent=1 // pred_fallthru
      _
    // Predicated region
    $region18: #{mlp_forward.1} parent=1 // pred_check
      _
    $region19: #{mlp_forward.1} parent=1 // pred_check_branch
      %50 = sbr.rel (0) target = $region21
    $region20: #{mlp_forward.1} parent=1 // pred_region
      %52 = dma.done [#allocation5], 2688
    $region21: #{mlp_forward.1} parent=1 // pred_fallthru
      _
    // Predicated region
    $region22: #{mlp_forward.1} parent=1 // pred_check
      _
    $region23: #{mlp_forward.1} parent=1 // pred_check_branch
      %54 = sbr.rel (0) target = $region25
    $region24: #{mlp_forward.1} parent=1 // pred_region
      %56 = dma.done [#allocation5], 64
    $region25: #{mlp_forward.1} parent=1 // pred_fallthru
      _
    %v57 = vld [vmem:[#allocation2] sm:$0xff]
    %v58 = vld [vmem:[#allocation4] sm:$0xff]
    %v59 = vld [vmem:[#allocation4 + $0x8] sm:$0xff]
    %v60 = vld [vmem:[#allocation4 + $0x10] sm:$0xff]
    %v61 = vld [vmem:[#allocation4 + $0x18] sm:$0xff]
    %v62 = vld [vmem:[#allocation6] sm:$0x1]
    %v63 = vperm.slane %v62, 0
    %vm64 = vcmask 261120
    %v66 = vsel %vm64, %v57, 0
    %68 = vmatpush.msra.mxu0 0.0
    %69 = vmatpush.msra.mxu0 0.0
    %70 = vmatpush.msra.mxu0 0.0
    %71 = vmatpush.msra.mxu0 0.0
    %72 = vmatpush.msra.mxu0 0.0
    %73 = vmatpush.msra.mxu0 0.0
    %74 = vmatpush.msra.mxu0 0.0
    %75 = vmatpush.msra.mxu0 0.0
    %76 = vmatpush.msra.mxu0 0.0
    %77 = vmatpush.msra.mxu0 0.0
    %78 = vmatpush.msra.mxu0 0.0
    %79 = vmatpush.msra.mxu0 0.0
    %80 = vmatpush.msra.mxu0 %v61
    %81 = vmatpush.msra.mxu0 %v60
    %82 = vmatpush.msra.mxu0 %v59
    %83 = vmatpush.msra.mxu0 %v58
    %84 = vmatmul.f32.gmra.mxu0 %v66
    %v85 = vpop.f32.mrf.mxu0
    %v86 = vadd.f32 %v63, %v85
    %87 = vdwg.mxu0
    %v88 = vmax.f32 %v86, 0.0
    %v89 = vld [vmem:[#allocation4 + $0x20] sm:$0xff]
    %v90 = vld [vmem:[#allocation4 + $0x28] sm:$0xff]
    %v91 = vld [vmem:[#allocation4 + $0x30] sm:$0xff]
    %v92 = vld [vmem:[#allocation4 + $0x38] sm:$0xff]
    %v93 = vld [vmem:[#allocation4 + $0x40] sm:$0xff]
    %v94 = vld [vmem:[#allocation4 + $0x48] sm:$0xff]
    %v95 = vld [vmem:[#allocation4 + $0x50] sm:$0xff]
    %v96 = vld [vmem:[#allocation4 + $0x58] sm:$0xff]
    %v97 = vld [vmem:[#allocation4 + $0x60] sm:$0xff]
    %v98 = vld [vmem:[#allocation4 + $0x68] sm:$0xff]
    %v99 = vld [vmem:[#allocation4 + $0x70] sm:$0xff]
    %v100 = vld [vmem:[#allocation4 + $0x78] sm:$0xff]
    %v101 = vld [vmem:[#allocation4 + $0x80] sm:$0xff]
    %v102 = vld [vmem:[#allocation4 + $0x88] sm:$0xff]
    %v103 = vld [vmem:[#allocation4 + $0x90] sm:$0xff]
    %v104 = vld [vmem:[#allocation4 + $0x98] sm:$0xff]
    %v105 = vld [vmem:[#allocation6 + $0x1] sm:$0x1]
    %v106 = vperm.slane %v105, 0
    %107 = vmatpush.msra.mxu0 %v104
    %108 = vmatpush.msra.mxu0 %v103
    %109 = vmatpush.msra.mxu0 %v102
    %110 = vmatpush.msra.mxu0 %v101
    %111 = vmatpush.msra.mxu0 %v100
    %112 = vmatpush.msra.mxu0 %v99
    %113 = vmatpush.msra.mxu0 %v98
    %114 = vmatpush.msra.mxu0 %v97
    %115 = vmatpush.msra.mxu0 %v96
    %116 = vmatpush.msra.mxu0 %v95
    %117 = vmatpush.msra.mxu0 %v94
    %118 = vmatpush.msra.mxu0 %v93
    %119 = vmatpush.msra.mxu0 %v92
    %120 = vmatpush.msra.mxu0 %v91
    %121 = vmatpush.msra.mxu0 %v90
    %122 = vmatpush.msra.mxu0 %v89
    %123 = vmatmul.f32.gmra.mxu0 %v88
    %v124 = vpop.f32.mrf.mxu0
    %v125 = vadd.f32 %v106, %v124
    %126 = vdwg.mxu0
    %v127 = vmax.f32 %v125, 0.0
    %v128 = vld [vmem:[#allocation4 + $0xa0] sm:$0x1]
    %v129 = vperm.slane %v128, 0
    %v130 = vmul.f32 %v127, %v129
    %131 = vadd.xlane.f32.xlu0 %v130
    %v132 = vpop.xlane.xlu0 %131
    %v133 = vld [vmem:[#allocation6 + $0x2] sm:$0x1]
    %v134 = vperm.slane %v133, 0
    %v135 = vadd.f32 %v132, %v134
    %v136 = vxor.u32 %v135, 2147483648
    %v137 = vmul.f32 %v136, 1.442695
    %v138 = vpow.pop %v137
    %v139 = vadd.f32 %v138, 1.0
    %v140 = vrcp.pop %v139
    %v141 = vmul.f32 %v139, %v140
    %v142 = vsub.f32 1.0, %v141
    %v143 = vmul.f32 %v140, %v142
    %v144 = vadd.f32 %v140, %v143
    %vm145 = vweird.f32 %v139
    %vm146 = vweird.f32 %v140
    %vm147 = vmor %vm145, %vm146
    %v148 = vsel %vm147, %v140, %v144
    %v149 = vand.u32 2147483647, %v139
    %vm150 = vcmp.eq.f32.partialorder %v149, 8.507059e+37
    %v151 = vand.u32 %v139, 2147483648
    %v152 = vor.u32 1.1754944e-38, %v151
    %v153 = vsel %vm150, %v152, %v148
    %v154 = vmul.f32 1.0, %v153
    %vm155 = vcmask 7168
    %156 = vst.msk [vmem:[%s3] sm:$0xff] %vm155, %v154
    // Predicated region
    $region26: #{mlp_forward.1} parent=1 // pred_check
      _
    $region27: #{mlp_forward.1} parent=1 // pred_check_branch
      %158 = sbr.rel (0) target = $region29
    $region28: #{mlp_forward.1} parent=1 // pred_region
      _
    $region29: #{mlp_forward.1} parent=1 // pred_fallthru
      _
    // Predicated region
    $region30: #{mlp_forward.1} parent=1 // pred_check
      _
    $region31: #{mlp_forward.1} parent=1 // pred_check_branch
      %160 = sbr.rel (0) target = $region33
    $region32: #{mlp_forward.1} parent=1 // pred_region
      _
    $region33: #{mlp_forward.1} parent=1 // pred_fallthru
      _
    %161 = vsyncpa [#allocation3], 1
    %162 = vsyncpa [#allocation5], 1

</llo_original>
